<compile_context>
chip_gen: v7x
topology: tpu7x:2x2x1
jax: 0.10.0
libtpu: 0.0.40
codegen_flags: <defaults>
</compile_context>

<pallas_src>
import numpy as np
import jax
import jax.numpy as jnp
from jax.experimental import pallas as pl
from jax.experimental.pallas import tpu as pltpu

# ----------------------- static configuration ------------------------------
L = 1            # args.L
P = 2            # num_perturbations
NODE = 4         # nodes per graph (regular structure)
G = 2            # number of graphs in the batch
F_IN = 8         # input_size
H = 32           # args.hidden_dim
OUT = 8          # output_size
ROWS = P * (L + 1) * NODE        # rows of data.x per graph = 16

GPN = G * P * NODE               # rows after copy-sum        = 16
GN = G * NODE                    # rows after perturbation-sum = 8
N_LAYERS = 7                     # 5 MLP blocks + 2 decoder linears


# ----------------------------- kernel ---------------------------------------
def se2p_kernel(x_ref, s_ref, w_ref, b_ref, o_ref):
    f32 = jnp.float32
    bf16 = jnp.bfloat16

    b_all = b_ref[...]                                   # (8, H) f32, one load

    def layer(v, i, k=H, relu=True):
        # Weight slab is bf16, zero-padded to (H, H); activations cast once.
        w = w_ref[i] if k == H else w_ref[i][:k, :]
        z = jnp.dot(v.astype(bf16), w,
                    preferred_element_type=f32) + b_all[i:i + 1, :]
        return jnp.maximum(z, 0.0) if relu else z

    def select(s, v):
        # 0/1 selection matmul == scatter-add, runs on the MXU.
        return jnp.dot(s, v.astype(bf16), preferred_element_type=f32)

    s1 = s_ref[0]                                        # (GPN, G*ROWS)
    s2 = s_ref[1][:GN, :GPN]                             # (GN, GPN)
    s3 = s_ref[2][:G, :GN]                               # (G, GN)

    h = layer(x_ref[...], 0, k=F_IN)     # mlp_local_combine   (G*ROWS, H)
    h = select(s1, h)                    # sum over L+1 copies  (GPN, H)
    h = layer(h, 1)                      # mlp_global_combine
    h = layer(h, 2)                      # mlp_local_merge
    h = select(s2, h)                    # sum over perturbations (GN, H)
    h = layer(h, 3)                      # mlp_global_merge
    h = layer(h, 4)                      # mlp_before_sum (dropout=id, eval)
    pooled = select(s3, h)               # global_add_pool      (G, H)

    d1 = layer(pooled, 5)                # decoder Linear(H, H//2)+ReLU (padded)
    logits = layer(d1, 6, relu=False)[:, :OUT]   # decoder Linear(H//2, OUT)

    # log_softmax over the class dim
    m = jnp.max(logits, axis=-1, keepdims=True)
    lse = m + jnp.log(jnp.sum(jnp.exp(logits - m), axis=-1, keepdims=True))
    o_ref[...] = logits - lse            # single static full store


# ----------------------- one-time parameter packing --------------------------
def pack_params(params):
    """Pack all weights/biases/selection matrices into 3 VMEM slabs (done once,
    outside the per-call path)."""
    w_slab = np.zeros((N_LAYERS, H, H), np.float32)
    b_slab = np.zeros((8, H), np.float32)          # 7 biases + 1 pad row
    for i, (w, b) in enumerate(params):
        w = np.asarray(w, np.float32)
        b = np.asarray(b, np.float32).reshape(-1)
        w_slab[i, :w.shape[0], :w.shape[1]] = w
        b_slab[i, :b.shape[0]] = b

    eye_node = np.eye(NODE, dtype=np.float32)
    # copy-sum:         (GPN, G*P*(L+1)*NODE)
    s1 = np.kron(np.eye(G * P, dtype=np.float32),
                 np.kron(np.ones((1, L + 1), np.float32), eye_node))
    # perturbation-sum: (GN, GPN)
    s2 = np.kron(np.eye(G, dtype=np.float32),
                 np.kron(np.ones((1, P), np.float32), eye_node))
    # graph pool:       (G, GN)
    s3 = np.kron(np.eye(G, dtype=np.float32),
                 np.ones((1, NODE), np.float32))

    s_slab = np.zeros((3, GPN, G * ROWS), np.float32)
    s_slab[0, :s1.shape[0], :s1.shape[1]] = s1
    s_slab[1, :s2.shape[0], :s2.shape[1]] = s2
    s_slab[2, :s3.shape[0], :s3.shape[1]] = s3

    return (jnp.asarray(w_slab, jnp.bfloat16),
            jnp.asarray(b_slab, jnp.float32),
            jnp.asarray(s_slab, jnp.bfloat16))


# ----------------------------- forward wrapper --------------------------------
@jax.jit
def se2p_forward(x, w_slab, b_slab, s_slab):
    vmem = pl.BlockSpec(memory_space=pltpu.MemorySpace.VMEM)
    return pl.pallas_call(
        se2p_kernel,
        out_shape=jax.ShapeDtypeStruct((G, OUT), jnp.float32),
        in_specs=[vmem] * 4,
        out_specs=vmem,
    )(x, s_slab, w_slab, b_slab)


# --------------------- deterministic parameter init --------------------------
def init_linear(key, fan_in, fan_out):
    kw, kb = jax.random.split(key)
    bound = 1.0 / jnp.sqrt(fan_in)
    w = jax.random.uniform(kw, (fan_in, fan_out), jnp.float32, -bound, bound)
    b = jax.random.uniform(kb, (1, fan_out), jnp.float32, -bound, bound)
    return w, b


def make_params(key):
    shapes = [
        (F_IN, H),        # mlp_local_combine
        (H, H),           # mlp_global_combine
        (H, H),           # mlp_local_merge
        (H, H),           # mlp_global_merge
        (H, H),           # mlp_before_sum
        (H, H // 2),      # decoder layer 1
        (H // 2, OUT),    # decoder layer 2
    ]
    keys = jax.random.split(key, len(shapes))
    return [init_linear(k, fi, fo) for k, (fi, fo) in zip(keys, shapes)]


# --------------------------- pure-JAX reference ------------------------------
# Mirrors the module's f32 math, except matmul operands are rounded to bf16
# (f32 accumulation) exactly like the kernel, per the performance review.
def ref_forward(x, params):
    ((w_lc, b_lc), (w_gc, b_gc), (w_lm, b_lm), (w_gm, b_gm),
     (w_bs, b_bs), (w_d1, b_d1), (w_d2, b_d2)) = params

    bf = lambda a: a.astype(jnp.bfloat16)
    rt = lambda a: bf(a).astype(jnp.float32)     # same rounding as kernel's
                                                 # cast before the scatter dots
    def lr(v, w, b):
        return jnp.maximum(
            jnp.dot(bf(v), bf(w), preferred_element_type=jnp.float32) + b, 0.0)

    h = lr(x, w_lc, b_lc)                                    # (G*ROWS, H)
    h = rt(h).reshape(G, P, L + 1, NODE, H).sum(axis=2)      # copy-sum
    h = lr(h.reshape(-1, H), w_gc, b_gc)
    h = lr(h, w_lm, b_lm)
    h = rt(h).reshape(G, P, NODE, H).sum(axis=1)             # perturbation-sum
    h = lr(h.reshape(-1, H), w_gm, b_gm)
    h = lr(h, w_bs, b_bs)
    h = rt(h).reshape(G, NODE, H).sum(axis=1)                # global_add_pool
    h = lr(h, w_d1, b_d1)
    logits = jnp.dot(bf(h), bf(w_d2),
                     preferred_element_type=jnp.float32) + b_d2
    return jax.nn.log_softmax(logits, axis=-1)


# ------------------------------- main -----------------------------------------
if __name__ == "__main__":
    key = jax.random.PRNGKey(0)
    kx, kp = jax.random.split(key)

    x = jax.random.normal(kx, (G * ROWS, F_IN), jnp.float32)
    params = make_params(kp)

    # One-time packing (hoisted out of the per-call path).
    w_slab, b_slab, s_slab = pack_params(params)

    out = se2p_forward(x, w_slab, b_slab, s_slab)
    out = jax.block_until_ready(out)

    ref = ref_forward(x, params)
    if not jnp.allclose(out, ref, atol=1e-3, rtol=1e-3):
        raise AssertionError("Pallas kernel output mismatch vs JAX reference")

    print("KERNEL_OK")
</pallas_src>

<mosaic_0001>
module attributes {stable_mosaic.version = 11 : i64} {
  func.func @se2p_kernel(%arg0: memref<32x8xf32, #tpu.memory_space<vmem>>, %arg1: memref<3x16x32xbf16, #tpu.memory_space<vmem>>, %arg2: memref<7x32x32xbf16, #tpu.memory_space<vmem>>, %arg3: memref<8x32xf32, #tpu.memory_space<vmem>>, %arg4: memref<2x8xf32, #tpu.memory_space<vmem>>) attributes {dimension_semantics = [], scalar_prefetch = 0 : i64, scratch_operands = 0 : i64, tpu.core_type = #tpu.core_type<tc>} {
    %c0 = arith.constant 0 : index
    %c0_0 = arith.constant 0 : index
    %0 = vector.load %arg3[%c0, %c0_0] : memref<8x32xf32, #tpu.memory_space<vmem>>, vector<8x32xf32>
    %c0_1 = arith.constant 0 : index
    %c0_2 = arith.constant 0 : index
    %c0_3 = arith.constant 0 : index
    %1 = vector.load %arg1[%c0_1, %c0_2, %c0_3] : memref<3x16x32xbf16, #tpu.memory_space<vmem>>, vector<1x16x32xbf16>
    %2 = vector.shape_cast %1 : vector<1x16x32xbf16> to vector<16x32xbf16>
    %c1 = arith.constant 1 : index
    %c0_4 = arith.constant 0 : index
    %c0_5 = arith.constant 0 : index
    %3 = vector.load %arg1[%c1, %c0_4, %c0_5] : memref<3x16x32xbf16, #tpu.memory_space<vmem>>, vector<1x16x32xbf16>
    %4 = vector.shape_cast %3 : vector<1x16x32xbf16> to vector<16x32xbf16>
    %5 = vector.extract_strided_slice %4 {offsets = [0, 0], sizes = [8, 16], strides = [1, 1]} : vector<16x32xbf16> to vector<8x16xbf16>
    %c2 = arith.constant 2 : index
    %c0_6 = arith.constant 0 : index
    %c0_7 = arith.constant 0 : index
    %6 = vector.load %arg1[%c2, %c0_6, %c0_7] : memref<3x16x32xbf16, #tpu.memory_space<vmem>>, vector<1x16x32xbf16>
    %7 = vector.shape_cast %6 : vector<1x16x32xbf16> to vector<16x32xbf16>
    %8 = vector.extract_strided_slice %7 {offsets = [0, 0], sizes = [2, 8], strides = [1, 1]} : vector<16x32xbf16> to vector<2x8xbf16>
    %c0_8 = arith.constant 0 : index
    %c0_9 = arith.constant 0 : index
    %9 = vector.load %arg0[%c0_8, %c0_9] : memref<32x8xf32, #tpu.memory_space<vmem>>, vector<32x8xf32>
    %c0_10 = arith.constant 0 : index
    %c0_11 = arith.constant 0 : index
    %c0_12 = arith.constant 0 : index
    %10 = vector.load %arg2[%c0_10, %c0_11, %c0_12] : memref<7x32x32xbf16, #tpu.memory_space<vmem>>, vector<1x32x32xbf16>
    %11 = vector.shape_cast %10 : vector<1x32x32xbf16> to vector<32x32xbf16>
    %12 = vector.extract_strided_slice %11 {offsets = [0, 0], sizes = [8, 32], strides = [1, 1]} : vector<32x32xbf16> to vector<8x32xbf16>
    %13 = arith.truncf %9 : vector<32x8xf32> to vector<32x8xbf16>
    %cst = arith.constant dense<0.000000e+00> : vector<32x32xf32>
    %14 = tpu.matmul %13, %12, %cst {dimension_numbers = #tpu.dot_dimension_numbers<[1], [0], [0], [1], [0, 0, 1, 1], [], []>} : vector<32x8xbf16>, vector<8x32xbf16>, vector<32x32xf32> -> vector<32x32xf32>
    %15 = vector.extract_strided_slice %0 {offsets = [0, 0], sizes = [1, 32], strides = [1, 1]} : vector<8x32xf32> to vector<1x32xf32>
    %16 = vector.broadcast %15 : vector<1x32xf32> to vector<32x32xf32>
    %17 = arith.addf %14, %16 : vector<32x32xf32>
    %cst_13 = arith.constant 0.000000e+00 : f32
    %18 = vector.broadcast %cst_13 : f32 to vector<32x32xf32>
    %19 = arith.maximumf %17, %18 : vector<32x32xf32>
    %20 = arith.truncf %19 : vector<32x32xf32> to vector<32x32xbf16>
    %cst_14 = arith.constant dense<0.000000e+00> : vector<16x32xf32>
    %21 = tpu.matmul %2, %20, %cst_14 {dimension_numbers = #tpu.dot_dimension_numbers<[1], [0], [0], [1], [0, 0, 1, 1], [], []>} : vector<16x32xbf16>, vector<32x32xbf16>, vector<16x32xf32> -> vector<16x32xf32>
    %c1_15 = arith.constant 1 : index
    %c0_16 = arith.constant 0 : index
    %c0_17 = arith.constant 0 : index
    %22 = vector.load %arg2[%c1_15, %c0_16, %c0_17] : memref<7x32x32xbf16, #tpu.memory_space<vmem>>, vector<1x32x32xbf16>
    %23 = vector.shape_cast %22 : vector<1x32x32xbf16> to vector<32x32xbf16>
    %24 = arith.truncf %21 : vector<16x32xf32> to vector<16x32xbf16>
    %cst_18 = arith.constant dense<0.000000e+00> : vector<16x32xf32>
    %25 = tpu.matmul %24, %23, %cst_18 {dimension_numbers = #tpu.dot_dimension_numbers<[1], [0], [0], [1], [0, 0, 1, 1], [], []>} : vector<16x32xbf16>, vector<32x32xbf16>, vector<16x32xf32> -> vector<16x32xf32>
    %26 = vector.extract_strided_slice %0 {offsets = [1, 0], sizes = [1, 32], strides = [1, 1]} : vector<8x32xf32> to vector<1x32xf32>
    %27 = vector.broadcast %26 : vector<1x32xf32> to vector<16x32xf32>
    %28 = arith.addf %25, %27 : vector<16x32xf32>
    %cst_19 = arith.constant 0.000000e+00 : f32
    %29 = vector.broadcast %cst_19 : f32 to vector<16x32xf32>
    %30 = arith.maximumf %28, %29 : vector<16x32xf32>
    %c2_20 = arith.constant 2 : index
    %c0_21 = arith.constant 0 : index
    %c0_22 = arith.constant 0 : index
    %31 = vector.load %arg2[%c2_20, %c0_21, %c0_22] : memref<7x32x32xbf16, #tpu.memory_space<vmem>>, vector<1x32x32xbf16>
    %32 = vector.shape_cast %31 : vector<1x32x32xbf16> to vector<32x32xbf16>
    %33 = arith.truncf %30 : vector<16x32xf32> to vector<16x32xbf16>
    %cst_23 = arith.constant dense<0.000000e+00> : vector<16x32xf32>
    %34 = tpu.matmul %33, %32, %cst_23 {dimension_numbers = #tpu.dot_dimension_numbers<[1], [0], [0], [1], [0, 0, 1, 1], [], []>} : vector<16x32xbf16>, vector<32x32xbf16>, vector<16x32xf32> -> vector<16x32xf32>
    %35 = vector.extract_strided_slice %0 {offsets = [2, 0], sizes = [1, 32], strides = [1, 1]} : vector<8x32xf32> to vector<1x32xf32>
    %36 = vector.broadcast %35 : vector<1x32xf32> to vector<16x32xf32>
    %37 = arith.addf %34, %36 : vector<16x32xf32>
    %cst_24 = arith.constant 0.000000e+00 : f32
    %38 = vector.broadcast %cst_24 : f32 to vector<16x32xf32>
    %39 = arith.maximumf %37, %38 : vector<16x32xf32>
    %40 = arith.truncf %39 : vector<16x32xf32> to vector<16x32xbf16>
    %cst_25 = arith.constant dense<0.000000e+00> : vector<8x32xf32>
    %41 = tpu.matmul %5, %40, %cst_25 {dimension_numbers = #tpu.dot_dimension_numbers<[1], [0], [0], [1], [0, 0, 1, 1], [], []>} : vector<8x16xbf16>, vector<16x32xbf16>, vector<8x32xf32> -> vector<8x32xf32>
    %c3 = arith.constant 3 : index
    %c0_26 = arith.constant 0 : index
    %c0_27 = arith.constant 0 : index
    %42 = vector.load %arg2[%c3, %c0_26, %c0_27] : memref<7x32x32xbf16, #tpu.memory_space<vmem>>, vector<1x32x32xbf16>
    %43 = vector.shape_cast %42 : vector<1x32x32xbf16> to vector<32x32xbf16>
    %44 = arith.truncf %41 : vector<8x32xf32> to vector<8x32xbf16>
    %cst_28 = arith.constant dense<0.000000e+00> : vector<8x32xf32>
    %45 = tpu.matmul %44, %43, %cst_28 {dimension_numbers = #tpu.dot_dimension_numbers<[1], [0], [0], [1], [0, 0, 1, 1], [], []>} : vector<8x32xbf16>, vector<32x32xbf16>, vector<8x32xf32> -> vector<8x32xf32>
    %46 = vector.extract_strided_slice %0 {offsets = [3, 0], sizes = [1, 32], strides = [1, 1]} : vector<8x32xf32> to vector<1x32xf32>
    %47 = vector.broadcast %46 : vector<1x32xf32> to vector<8x32xf32>
    %48 = arith.addf %45, %47 : vector<8x32xf32>
    %cst_29 = arith.constant 0.000000e+00 : f32
    %49 = vector.broadcast %cst_29 : f32 to vector<8x32xf32>
    %50 = arith.maximumf %48, %49 : vector<8x32xf32>
    %c4 = arith.constant 4 : index
    %c0_30 = arith.constant 0 : index
    %c0_31 = arith.constant 0 : index
    %51 = vector.load %arg2[%c4, %c0_30, %c0_31] : memref<7x32x32xbf16, #tpu.memory_space<vmem>>, vector<1x32x32xbf16>
    %52 = vector.shape_cast %51 : vector<1x32x32xbf16> to vector<32x32xbf16>
    %53 = arith.truncf %50 : vector<8x32xf32> to vector<8x32xbf16>
    %cst_32 = arith.constant dense<0.000000e+00> : vector<8x32xf32>
    %54 = tpu.matmul %53, %52, %cst_32 {dimension_numbers = #tpu.dot_dimension_numbers<[1], [0], [0], [1], [0, 0, 1, 1], [], []>} : vector<8x32xbf16>, vector<32x32xbf16>, vector<8x32xf32> -> vector<8x32xf32>
    %55 = vector.extract_strided_slice %0 {offsets = [4, 0], sizes = [1, 32], strides = [1, 1]} : vector<8x32xf32> to vector<1x32xf32>
    %56 = vector.broadcast %55 : vector<1x32xf32> to vector<8x32xf32>
    %57 = arith.addf %54, %56 : vector<8x32xf32>
    %cst_33 = arith.constant 0.000000e+00 : f32
    %58 = vector.broadcast %cst_33 : f32 to vector<8x32xf32>
    %59 = arith.maximumf %57, %58 : vector<8x32xf32>
    %60 = arith.truncf %59 : vector<8x32xf32> to vector<8x32xbf16>
    %cst_34 = arith.constant dense<0.000000e+00> : vector<2x32xf32>
    %61 = tpu.matmul %8, %60, %cst_34 {dimension_numbers = #tpu.dot_dimension_numbers<[1], [0], [0], [1], [0, 0, 1, 1], [], []>} : vector<2x8xbf16>, vector<8x32xbf16>, vector<2x32xf32> -> vector<2x32xf32>
    %c5 = arith.constant 5 : index
    %c0_35 = arith.constant 0 : index
    %c0_36 = arith.constant 0 : index
    %62 = vector.load %arg2[%c5, %c0_35, %c0_36] : memref<7x32x32xbf16, #tpu.memory_space<vmem>>, vector<1x32x32xbf16>
    %63 = vector.shape_cast %62 : vector<1x32x32xbf16> to vector<32x32xbf16>
    %64 = arith.truncf %61 : vector<2x32xf32> to vector<2x32xbf16>
    %cst_37 = arith.constant dense<0.000000e+00> : vector<2x32xf32>
    %65 = tpu.matmul %64, %63, %cst_37 {dimension_numbers = #tpu.dot_dimension_numbers<[1], [0], [0], [1], [0, 0, 1, 1], [], []>} : vector<2x32xbf16>, vector<32x32xbf16>, vector<2x32xf32> -> vector<2x32xf32>
    %66 = vector.extract_strided_slice %0 {offsets = [5, 0], sizes = [1, 32], strides = [1, 1]} : vector<8x32xf32> to vector<1x32xf32>
    %67 = vector.broadcast %66 : vector<1x32xf32> to vector<2x32xf32>
    %68 = arith.addf %65, %67 : vector<2x32xf32>
    %cst_38 = arith.constant 0.000000e+00 : f32
    %69 = vector.broadcast %cst_38 : f32 to vector<2x32xf32>
    %70 = arith.maximumf %68, %69 : vector<2x32xf32>
    %c6 = arith.constant 6 : index
    %c0_39 = arith.constant 0 : index
    %c0_40 = arith.constant 0 : index
    %71 = vector.load %arg2[%c6, %c0_39, %c0_40] : memref<7x32x32xbf16, #tpu.memory_space<vmem>>, vector<1x32x32xbf16>
    %72 = vector.shape_cast %71 : vector<1x32x32xbf16> to vector<32x32xbf16>
    %73 = arith.truncf %70 : vector<2x32xf32> to vector<2x32xbf16>
    %cst_41 = arith.constant dense<0.000000e+00> : vector<2x32xf32>
    %74 = tpu.matmul %73, %72, %cst_41 {dimension_numbers = #tpu.dot_dimension_numbers<[1], [0], [0], [1], [0, 0, 1, 1], [], []>} : vector<2x32xbf16>, vector<32x32xbf16>, vector<2x32xf32> -> vector<2x32xf32>
    %75 = vector.extract_strided_slice %0 {offsets = [6, 0], sizes = [1, 32], strides = [1, 1]} : vector<8x32xf32> to vector<1x32xf32>
    %76 = vector.broadcast %75 : vector<1x32xf32> to vector<2x32xf32>
    %77 = arith.addf %74, %76 : vector<2x32xf32>
    %78 = vector.extract_strided_slice %77 {offsets = [0, 0], sizes = [2, 8], strides = [1, 1]} : vector<2x32xf32> to vector<2x8xf32>
    %cst_42 = arith.constant dense<0xFF800000> : vector<2xf32>
    %79 = vector.multi_reduction <maximumf>, %78, %cst_42 [1] : vector<2x8xf32> to vector<2xf32>
    %80 = vector.shape_cast %79 : vector<2xf32> to vector<2x1xf32>
    %81 = vector.broadcast %80 : vector<2x1xf32> to vector<2x8xf32>
    %82 = arith.subf %78, %81 : vector<2x8xf32>
    %83 = math.exp %82 : vector<2x8xf32>
    %cst_43 = arith.constant dense<0.000000e+00> : vector<2xf32>
    %84 = vector.multi_reduction <add>, %83, %cst_43 [1] : vector<2x8xf32> to vector<2xf32>
    %85 = vector.shape_cast %84 : vector<2xf32> to vector<2x1xf32>
    %86 = math.log %85 : vector<2x1xf32>
    %87 = arith.addf %80, %86 : vector<2x1xf32>
    %88 = vector.broadcast %87 : vector<2x1xf32> to vector<2x8xf32>
    %89 = arith.subf %78, %88 : vector<2x8xf32>
    %c0_44 = arith.constant 0 : index
    %c0_45 = arith.constant 0 : index
    %90 = vector.load %arg4[%c0_44, %c0_45] : memref<2x8xf32, #tpu.memory_space<vmem>>, vector<2x8xf32>
    tpu.vector_store %arg4[%c0_44, %c0_45], %89 {strides = array<i32>} : memref<2x8xf32, #tpu.memory_space<vmem>>, vector<2x8xf32>,
    return
  }
}

</mosaic_0001>

<llo_original>
// kernel: se2p_forward.1
$region0: #{se2p_forward.1}
  #allocation0 [shape = 'u32[]', space=smem, size = 0x4, offset = 0x4, fixed_abs, tag = 'smem constant byte address 0x4 - core index']
  #allocation1 [shape = 'u32[144,128]{1,0:T(1,128)}', space=vmem, size = 0x12000, scoped, tag = 'internal scratch']
  %s0 = inlined_call_operand.vmem [shape: f32[32,8], index: 0, kind: input, shape index: {}]
  %s1 = inlined_call_operand.vmem [shape: bf16[3,16,32], index: 1, kind: input, shape index: {}]
  %s2 = inlined_call_operand.hbm [shape: bf16[7,32,32], index: 2, kind: input, shape index: {}]
  %s3 = inlined_call_operand.vmem [shape: f32[8,32], index: 3, kind: input, shape index: {}]
  %s4 = inlined_call_operand.hbm [shape: f32[2,8], index: 4, kind: output, shape index: {}]
  %s5 = sld [smem:[#allocation0]]
  $region30: #{se2p_forward.1} parent=0
    _
  %s7 = ssub.s32 1, %s5
  %s8 = scalar_select 0, %s7, %s5
  $region1: #{se2p_forward.1} parent=0
    #allocation2 [shape = 'u8[57344]{0}', space=vmem, size = 0xe000, scoped, tag = 'input window, operand 2, single buffered']
    #allocation3 [shape = 's32[1]{0}', space=sflag, size = 0x4, scoped, tag = 'scoped memory for se2p_forward.1']
    #allocation4 [shape = 's32[1]{0}', space=sflag, size = 0x4, scoped, tag = 'scoped memory for se2p_forward.1']
    #allocation5 [shape = 'u8[1024]{0}', space=vmem, size = 0x400, scoped, tag = 'output window, operand 0, single buffered']
    %9 = vsyncpa [#allocation3], 0
    %10 = vsyncpa [#allocation4], 0
    // Predicated region
    $region2: #{se2p_forward.1} parent=1 // pred_check
      _
    $region3: #{se2p_forward.1} parent=1 // pred_check_branch
      %12 = sbr.rel (0) target = $region5
    $region4: #{se2p_forward.1} parent=1 // pred_region
      _
    $region5: #{se2p_forward.1} parent=1 // pred_fallthru
      _
    // Predicated region
    $region6: #{se2p_forward.1} parent=1 // pred_check
      _
    $region7: #{se2p_forward.1} parent=1 // pred_check_branch
      %14 = sbr.rel (0) target = $region9
    $region8: #{se2p_forward.1} parent=1 // pred_region
      _
    $region9: #{se2p_forward.1} parent=1 // pred_fallthru
      _
    // Predicated region
    $region10: #{se2p_forward.1} parent=1 // pred_check
      _
    $region11: #{se2p_forward.1} parent=1 // pred_check_branch
      %16 = sbr.rel (0) target = $region13
    $region12: #{se2p_forward.1} parent=1 // pred_region
      %s18 = ssub.s32 1792, 1792
      %19 = vsyncadd [#allocation3], %s18
      %s20 = sshll.u32 [#allocation2], 4
      %s21 = int_to_ptr.vmem [resolvable:$true] %s20
      %26 = dma.hbm_to_vmem [thread:$0]  %s2, 1792, %s21, [#allocation3], 64, 64, 4
    $region13: #{se2p_forward.1} parent=1 // pred_fallthru
      _
    // Predicated region
    $region14: #{se2p_forward.1} parent=1 // pred_check
      _
    $region15: #{se2p_forward.1} parent=1 // pred_check_branch
      %28 = sbr.rel (0) target = $region17
    $region16: #{se2p_forward.1} parent=1 // pred_region
      _
    $region17: #{se2p_forward.1} parent=1 // pred_fallthru
      _
    // Predicated region
    $region18: #{se2p_forward.1} parent=1 // pred_check
      _
    $region19: #{se2p_forward.1} parent=1 // pred_check_branch
      %30 = sbr.rel (0) target = $region21
    $region20: #{se2p_forward.1} parent=1 // pred_region
      %31 = dma.done [#allocation3], 1792
    $region21: #{se2p_forward.1} parent=1 // pred_fallthru
      _
    %v33 = vld [vmem:[%s3] sm:$0xff]
    %v34 = vld [vmem:[%s1] sm:$0xf]
    %v35 = vld [vmem:[%s1 + $0x4] sm:$0xf]
    %s36 = scalar_lea.vmem %s1, 8
    %v37 = vld [vmem:[%s36] sm:$0xf]
    %s38 = scalar_lea.vmem %s1, 16
    %v39 = vld [vmem:[%s38] sm:$0xf]
    %v40 = vld [vmem:[%s0] sm:$0xff]
    %v41 = vld [vmem:[%s0 + $0x8] sm:$0xff]
    %v42 = vld [vmem:[%s0 + $0x10] sm:$0xff]
    %v43 = vld [vmem:[%s0 + $0x18] sm:$0xff]
    %v44 = vld [vmem:[#allocation2] sm:$0xf]
    %v45 = vpack.c.bf16 %v41, %v40
    %v46 = vpack.c.bf16 %v43, %v42
    %v47 = vlaneseq
    %v48 = vshrl.u32 %v47, 7
    %v49 = vsub.s32 0, %v48
    %v50 = vrot.slane %v33, %v49
    %vm51 = vcmask 64512
    %v53 = vsel %vm51, %v45, 0
    %v56 = vsel %vm51, %v46, 0
    %vm58 = vcmask 1043456
    %v60 = vsel %vm58, %v44, 0
    %62 = vmatprep.subr.bf16.mxu0 0
    %63 = vmatpush1.bf16.msra.mxu0 %v60
    %64 = vmatprep.subr.bf16.mxu0 0
    %65 = vmatpush1.bf16.msra.mxu0 0
    %66 = vmatprep.subr.bf16.mxu0 0
    %67 = vmatpush1.bf16.msra.mxu0 0
    %68 = vmatprep.subr.bf16.mxu0 0
    %69 = vmatpush1.bf16.msra.mxu0 0
    %70 = vmatprep.subr.bf16.mxu0 0
    %71 = vmatpush1.bf16.msra.mxu0 0
    %72 = vmatprep.subr.bf16.mxu0 0
    %73 = vmatpush1.bf16.msra.mxu0 0
    %74 = vmatprep.subr.bf16.mxu0 0
    %75 = vmatpush1.bf16.msra.mxu0 0
    %76 = vmatprep.subr.bf16.mxu0 0
    %77 = vmatpush1.bf16.msra.mxu0 0
    %78 = vmatprep.subr.bf16.mxu0 0
    %79 = vmatpush1.bf16.msra.mxu0 0
    %80 = vmatprep.subr.bf16.mxu0 0
    %81 = vmatpush1.bf16.msra.mxu0 0
    %82 = vmatprep.subr.bf16.mxu0 0
    %83 = vmatpush1.bf16.msra.mxu0 0
    %84 = vmatprep.subr.bf16.mxu0 0
    %85 = vmatpush1.bf16.msra.mxu0 0
    %86 = vmatprep.subr.bf16.mxu0 0
    %87 = vmatpush1.bf16.msra.mxu0 0
    %88 = vmatprep.subr.bf16.mxu0 0
    %89 = vmatpush1.bf16.msra.mxu0 0
    %90 = vmatprep.subr.bf16.mxu0 0
    %91 = vmatpush1.bf16.msra.mxu0 0
    %92 = vmatprep.subr.bf16.mxu0 0
    %93 = vmatpush1.bf16.msra.mxu0 0
    %94 = vmatprep.mubr.bf16.mxu0 0
    %95 = vmatmul.mubr.bf16.gmra.mrb[0].mxu0 %v53
    %v96 = vpop.f32.mrb[0].mxu0
    %v97 = vadd.f32 %v50, %v96
    %v98 = vpop.f32.mrb[0].mxu0
    %v99 = vpop.f32.mrb[0].mxu0
    %v100 = vadd.f32 %v50, %v99
    %v101 = vpop.f32.mrb[0].mxu0
    %102 = vmatprep.mubr.bf16.mxu0 0
    %103 = vmatmul.mubr.bf16.gmra.mrb[0].mxu0 %v56
    %v104 = vpop.f32.mrb[0].mxu0
    %v105 = vadd.f32 %v50, %v104
    %v106 = vpop.f32.mrb[0].mxu0
    %v107 = vpop.f32.mrb[0].mxu0
    %v108 = vadd.f32 %v50, %v107
    %v109 = vpop.f32.mrb[0].mxu0
    %110 = vdwg.mxu0
    %v111 = vmax.f32 %v97, 0.0
    %v112 = vmax.f32 %v100, 0.0
    %v113 = vmax.f32 %v105, 0.0
    %v114 = vmax.f32 %v108, 0.0
    %v115 = vpack.c.bf16 %v112, %v111
    %v116 = vpack.c.bf16 %v114, %v113
    %v119 = vunpack.c.l.b16 %v34
    %v120 = vunpack.c.l.b16 %v35
    %v121 = vpack.c.b16 %v120, %v119
    %vm122 = vcmask 261120
    %v124 = vsel %vm122, %v121, 0
    %126 = vmatprep.subr.bf16.mxu0 0
    %127 = vmatpush1.bf16.msra.mxu0 %v115
    %128 = vmatprep.subr.bf16.mxu0 0
    %129 = vmatpush1.bf16.msra.mxu0 %v116
    %130 = vmatprep.subr.bf16.mxu0 0
    %131 = vmatpush1.bf16.msra.mxu0 0
    %132 = vmatprep.subr.bf16.mxu0 0
    %133 = vmatpush1.bf16.msra.mxu0 0
    %134 = vmatprep.subr.bf16.mxu0 0
    %135 = vmatpush1.bf16.msra.mxu0 0
    %136 = vmatprep.subr.bf16.mxu0 0
    %137 = vmatpush1.bf16.msra.mxu0 0
    %138 = vmatprep.subr.bf16.mxu0 0
    %139 = vmatpush1.bf16.msra.mxu0 0
    %140 = vmatprep.subr.bf16.mxu0 0
    %141 = vmatpush1.bf16.msra.mxu0 0
    %142 = vmatprep.subr.bf16.mxu0 0
    %143 = vmatpush1.bf16.msra.mxu0 0
    %144 = vmatprep.subr.bf16.mxu0 0
    %145 = vmatpush1.bf16.msra.mxu0 0
    %146 = vmatprep.subr.bf16.mxu0 0
    %147 = vmatpush1.bf16.msra.mxu0 0
    %148 = vmatprep.subr.bf16.mxu0 0
    %149 = vmatpush1.bf16.msra.mxu0 0
    %150 = vmatprep.subr.bf16.mxu0 0
    %151 = vmatpush1.bf16.msra.mxu0 0
    %152 = vmatprep.subr.bf16.mxu0 0
    %153 = vmatpush1.bf16.msra.mxu0 0
    %154 = vmatprep.subr.bf16.mxu0 0
    %155 = vmatpush1.bf16.msra.mxu0 0
    %156 = vmatprep.subr.bf16.mxu0 0
    %157 = vmatpush1.bf16.msra.mxu0 0
    %158 = vmatprep.mubr.bf16.mxu0 0
    %159 = vmatmul.mubr.bf16.gmra.mrb[0].mxu0 %v124
    %v160 = vpop.f32.mrb[0].mxu0
    %v161 = vadd.f32 0.0, %v160
    %v162 = vpop.f32.mrb[0].mxu0
    %v163 = vpop.f32.mrb[0].mxu0
    %v164 = vadd.f32 0.0, %v163
    %v165 = vpop.f32.mrb[0].mxu0
    %166 = vdwg.mxu0
    %s167 = scalar_lea.vmem [#allocation2], 16
    %v168 = vld [vmem:[%s167] sm:$0xf]
    %v169 = vld [vmem:[%s167 + $0x4] sm:$0xf]
    %v170 = vld [vmem:[%s167 + $0x8] sm:$0xf]
    %v171 = vld [vmem:[%s167 + $0xc] sm:$0xf]
    %v172 = vpack.c.bf16 %v164, %v161
    %v173 = vlaneseq
    %v174 = vshrl.u32 %v173, 7
    %v175 = vsub.s32 1, %v174
    %v176 = vrot.slane %v33, %v175
    %v181 = vunpack.c.l.b16 %v168
    %v182 = vunpack.c.l.b16 %v169
    %v183 = vunpack.c.l.b16 %v170
    %v184 = vunpack.c.l.b16 %v171
    %v185 = vpack.c.b16 %v182, %v181
    %v186 = vpack.c.b16 %v184, %v183
    %v190 = vsel %vm122, %v172, 0
    %192 = vmatprep.subr.bf16.mxu0 0
    %193 = vmatpush1.bf16.msra.mxu0 %v185
    %194 = vmatprep.subr.bf16.mxu0 0
    %195 = vmatpush1.bf16.msra.mxu0 %v186
    %196 = vmatprep.subr.bf16.mxu0 0
    %197 = vmatpush1.bf16.msra.mxu0 0
    %198 = vmatprep.subr.bf16.mxu0 0
    %199 = vmatpush1.bf16.msra.mxu0 0
    %200 = vmatprep.subr.bf16.mxu0 0
    %201 = vmatpush1.bf16.msra.mxu0 0
    %202 = vmatprep.subr.bf16.mxu0 0
    %203 = vmatpush1.bf16.msra.mxu0 0
    %204 = vmatprep.subr.bf16.mxu0 0
    %205 = vmatpush1.bf16.msra.mxu0 0
    %206 = vmatprep.subr.bf16.mxu0 0
    %207 = vmatpush1.bf16.msra.mxu0 0
    %208 = vmatprep.subr.bf16.mxu0 0
    %209 = vmatpush1.bf16.msra.mxu0 0
    %210 = vmatprep.subr.bf16.mxu0 0
    %211 = vmatpush1.bf16.msra.mxu0 0
    %212 = vmatprep.subr.bf16.mxu0 0
    %213 = vmatpush1.bf16.msra.mxu0 0
    %214 = vmatprep.subr.bf16.mxu0 0
    %215 = vmatpush1.bf16.msra.mxu0 0
    %216 = vmatprep.subr.bf16.mxu0 0
    %217 = vmatpush1.bf16.msra.mxu0 0
    %218 = vmatprep.subr.bf16.mxu0 0
    %219 = vmatpush1.bf16.msra.mxu0 0
    %220 = vmatprep.subr.bf16.mxu0 0
    %221 = vmatpush1.bf16.msra.mxu0 0
    %222 = vmatprep.subr.bf16.mxu0 0
    %223 = vmatpush1.bf16.msra.mxu0 0
    %224 = vmatprep.mubr.bf16.mxu0 0
    %225 = vmatmul.mubr.bf16.gmra.mrb[0].mxu0 %v190
    %v226 = vpop.f32.mrb[0].mxu0
    %v227 = vadd.f32 %v176, %v226
    %v228 = vpop.f32.mrb[0].mxu0
    %v229 = vpop.f32.mrb[0].mxu0
    %v230 = vadd.f32 %v176, %v229
    %v231 = vpop.f32.mrb[0].mxu0
    %232 = vdwg.mxu0
    %v233 = vmax.f32 %v227, 0.0
    %v234 = vmax.f32 %v230, 0.0
    %s235 = scalar_lea.vmem [#allocation2], 32
    %v236 = vld [vmem:[%s235] sm:$0xf]
    %v237 = vld [vmem:[%s235 + $0x4] sm:$0xf]
    %v238 = vld [vmem:[%s235 + $0x8] sm:$0xf]
    %v239 = vld [vmem:[%s235 + $0xc] sm:$0xf]
    %v240 = vpack.c.bf16 %v234, %v233
    %v241 = vlaneseq
    %v242 = vshrl.u32 %v241, 7
    %v243 = vsub.s32 2, %v242
    %v244 = vrot.slane %v33, %v243
    %v249 = vunpack.c.l.b16 %v236
    %v250 = vunpack.c.l.b16 %v237
    %v251 = vunpack.c.l.b16 %v238
    %v252 = vunpack.c.l.b16 %v239
    %v253 = vpack.c.b16 %v250, %v249
    %v254 = vpack.c.b16 %v252, %v251
    %v258 = vsel %vm122, %v240, 0
    %260 = vmatprep.subr.bf16.mxu0 0
    %261 = vmatpush1.bf16.msra.mxu0 %v253
    %262 = vmatprep.subr.bf16.mxu0 0
    %263 = vmatpush1.bf16.msra.mxu0 %v254
    %264 = vmatprep.subr.bf16.mxu0 0
    %265 = vmatpush1.bf16.msra.mxu0 0
    %266 = vmatprep.subr.bf16.mxu0 0
    %267 = vmatpush1.bf16.msra.mxu0 0
    %268 = vmatprep.subr.bf16.mxu0 0
    %269 = vmatpush1.bf16.msra.mxu0 0
    %270 = vmatprep.subr.bf16.mxu0 0
    %271 = vmatpush1.bf16.msra.mxu0 0
    %272 = vmatprep.subr.bf16.mxu0 0
    %273 = vmatpush1.bf16.msra.mxu0 0
    %274 = vmatprep.subr.bf16.mxu0 0
    %275 = vmatpush1.bf16.msra.mxu0 0
    %276 = vmatprep.subr.bf16.mxu0 0
    %277 = vmatpush1.bf16.msra.mxu0 0
    %278 = vmatprep.subr.bf16.mxu0 0
    %279 = vmatpush1.bf16.msra.mxu0 0
    %280 = vmatprep.subr.bf16.mxu0 0
    %281 = vmatpush1.bf16.msra.mxu0 0
    %282 = vmatprep.subr.bf16.mxu0 0
    %283 = vmatpush1.bf16.msra.mxu0 0
    %284 = vmatprep.subr.bf16.mxu0 0
    %285 = vmatpush1.bf16.msra.mxu0 0
    %286 = vmatprep.subr.bf16.mxu0 0
    %287 = vmatpush1.bf16.msra.mxu0 0
    %288 = vmatprep.subr.bf16.mxu0 0
    %289 = vmatpush1.bf16.msra.mxu0 0
    %290 = vmatprep.subr.bf16.mxu0 0
    %291 = vmatpush1.bf16.msra.mxu0 0
    %292 = vmatprep.mubr.bf16.mxu0 0
    %293 = vmatmul.mubr.bf16.gmra.mrb[0].mxu0 %v258
    %v294 = vpop.f32.mrb[0].mxu0
    %v295 = vadd.f32 %v244, %v294
    %v296 = vpop.f32.mrb[0].mxu0
    %v297 = vpop.f32.mrb[0].mxu0
    %v298 = vadd.f32 %v244, %v297
    %v299 = vpop.f32.mrb[0].mxu0
    %300 = vdwg.mxu0
    %v301 = vmax.f32 %v295, 0.0
    %v302 = vmax.f32 %v298, 0.0
    %v303 = vpack.c.bf16 %v302, %v301
    %vm304 = vcmask 130048
    %v306 = vsel %vm304, %v37, 0
    %308 = vmatprep.subr.bf16.mxu0 0
    %309 = vmatpush1.bf16.msra.mxu0 %v303
    %310 = vmatprep.subr.bf16.mxu0 0
    %311 = vmatpush1.bf16.msra.mxu0 0
    %312 = vmatprep.subr.bf16.mxu0 0
    %313 = vmatpush1.bf16.msra.mxu0 0
    %314 = vmatprep.subr.bf16.mxu0 0
    %315 = vmatpush1.bf16.msra.mxu0 0
    %316 = vmatprep.subr.bf16.mxu0 0
    %317 = vmatpush1.bf16.msra.mxu0 0
    %318 = vmatprep.subr.bf16.mxu0 0
    %319 = vmatpush1.bf16.msra.mxu0 0
    %320 = vmatprep.subr.bf16.mxu0 0
    %321 = vmatpush1.bf16.msra.mxu0 0
    %322 = vmatprep.subr.bf16.mxu0 0
    %323 = vmatpush1.bf16.msra.mxu0 0
    %324 = vmatprep.subr.bf16.mxu0 0
    %325 = vmatpush1.bf16.msra.mxu0 0
    %326 = vmatprep.subr.bf16.mxu0 0
    %327 = vmatpush1.bf16.msra.mxu0 0
    %328 = vmatprep.subr.bf16.mxu0 0
    %329 = vmatpush1.bf16.msra.mxu0 0
    %330 = vmatprep.subr.bf16.mxu0 0
    %331 = vmatpush1.bf16.msra.mxu0 0
    %332 = vmatprep.subr.bf16.mxu0 0
    %333 = vmatpush1.bf16.msra.mxu0 0
    %334 = vmatprep.subr.bf16.mxu0 0
    %335 = vmatpush1.bf16.msra.mxu0 0
    %336 = vmatprep.subr.bf16.mxu0 0
    %337 = vmatpush1.bf16.msra.mxu0 0
    %338 = vmatprep.subr.bf16.mxu0 0
    %339 = vmatpush1.bf16.msra.mxu0 0
    %340 = vmatprep.mubr.bf16.mxu0 0
    %341 = vmatmul.mubr.bf16.gmra.mrb[0].mxu0 %v306
    %v342 = vpop.f32.mrb[0].mxu0
    %v343 = vadd.f32 0.0, %v342
    %v344 = vpop.f32.mrb[0].mxu0
    %v345 = vpop.f32.mrb[0].mxu0
    %v346 = vpop.f32.mrb[0].mxu0
    %347 = vdwg.mxu0
    %s348 = scalar_lea.vmem [#allocation2], 48
    %v349 = vld [vmem:[%s348] sm:$0xf]
    %v350 = vld [vmem:[%s348 + $0x4] sm:$0xf]
    %v351 = vld [vmem:[%s348 + $0x8] sm:$0xf]
    %v352 = vld [vmem:[%s348 + $0xc] sm:$0xf]
    %v353 = vpack.c.bf16 %v343, %v343
    %v354 = vlaneseq
    %v355 = vshrl.u32 %v354, 7
    %v356 = vsub.s32 3, %v355
    %v357 = vrot.slane %v33, %v356
    %v362 = vunpack.c.l.b16 %v349
    %v363 = vunpack.c.l.b16 %v350
    %v364 = vunpack.c.l.b16 %v351
    %v365 = vunpack.c.l.b16 %v352
    %v366 = vpack.c.b16 %v363, %v362
    %v367 = vpack.c.b16 %v365, %v364
    %v371 = vsel %vm122, %v353, 0
    %373 = vmatprep.subr.bf16.mxu0 0
    %374 = vmatpush1.bf16.msra.mxu0 %v366
    %375 = vmatprep.subr.bf16.mxu0 0
    %376 = vmatpush1.bf16.msra.mxu0 %v367
    %377 = vmatprep.subr.bf16.mxu0 0
    %378 = vmatpush1.bf16.msra.mxu0 0
    %379 = vmatprep.subr.bf16.mxu0 0
    %380 = vmatpush1.bf16.msra.mxu0 0
    %381 = vmatprep.subr.bf16.mxu0 0
    %382 = vmatpush1.bf16.msra.mxu0 0
    %383 = vmatprep.subr.bf16.mxu0 0
    %384 = vmatpush1.bf16.msra.mxu0 0
    %385 = vmatprep.subr.bf16.mxu0 0
    %386 = vmatpush1.bf16.msra.mxu0 0
    %387 = vmatprep.subr.bf16.mxu0 0
    %388 = vmatpush1.bf16.msra.mxu0 0
    %389 = vmatprep.subr.bf16.mxu0 0
    %390 = vmatpush1.bf16.msra.mxu0 0
    %391 = vmatprep.subr.bf16.mxu0 0
    %392 = vmatpush1.bf16.msra.mxu0 0
    %393 = vmatprep.subr.bf16.mxu0 0
    %394 = vmatpush1.bf16.msra.mxu0 0
    %395 = vmatprep.subr.bf16.mxu0 0
    %396 = vmatpush1.bf16.msra.mxu0 0
    %397 = vmatprep.subr.bf16.mxu0 0
    %398 = vmatpush1.bf16.msra.mxu0 0
    %399 = vmatprep.subr.bf16.mxu0 0
    %400 = vmatpush1.bf16.msra.mxu0 0
    %401 = vmatprep.subr.bf16.mxu0 0
    %402 = vmatpush1.bf16.msra.mxu0 0
    %403 = vmatprep.subr.bf16.mxu0 0
    %404 = vmatpush1.bf16.msra.mxu0 0
    %405 = vmatprep.mubr.bf16.mxu0 0
    %406 = vmatmul.mubr.bf16.gmra.mrb[0].mxu0 %v371
    %v407 = vpop.f32.mrb[0].mxu0
    %v408 = vadd.f32 %v357, %v407
    %v409 = vpop.f32.mrb[0].mxu0
    %v410 = vpop.f32.mrb[0].mxu0
    %v411 = vpop.f32.mrb[0].mxu0
    %412 = vdwg.mxu0
    %v413 = vmax.f32 %v408, 0.0
    %s414 = scalar_lea.vmem [#allocation2], 64
    %v415 = vld [vmem:[%s414] sm:$0xf]
    %v416 = vld [vmem:[%s414 + $0x4] sm:$0xf]
    %v417 = vld [vmem:[%s414 + $0x8] sm:$0xf]
    %v418 = vld [vmem:[%s414 + $0xc] sm:$0xf]
    %v419 = vpack.c.bf16 %v413, %v413
    %v420 = vlaneseq
    %v421 = vshrl.u32 %v420, 7
    %v422 = vsub.s32 4, %v421
    %v423 = vrot.slane %v33, %v422
    %v428 = vunpack.c.l.b16 %v415
    %v429 = vunpack.c.l.b16 %v416
    %v430 = vunpack.c.l.b16 %v417
    %v431 = vunpack.c.l.b16 %v418
    %v432 = vpack.c.b16 %v429, %v428
    %v433 = vpack.c.b16 %v431, %v430
    %v437 = vsel %vm122, %v419, 0
    %439 = vmatprep.subr.bf16.mxu0 0
    %440 = vmatpush1.bf16.msra.mxu0 %v432
    %441 = vmatprep.subr.bf16.mxu0 0
    %442 = vmatpush1.bf16.msra.mxu0 %v433
    %443 = vmatprep.subr.bf16.mxu0 0
    %444 = vmatpush1.bf16.msra.mxu0 0
    %445 = vmatprep.subr.bf16.mxu0 0
    %446 = vmatpush1.bf16.msra.mxu0 0
    %447 = vmatprep.subr.bf16.mxu0 0
    %448 = vmatpush1.bf16.msra.mxu0 0
    %449 = vmatprep.subr.bf16.mxu0 0
    %450 = vmatpush1.bf16.msra.mxu0 0
    %451 = vmatprep.subr.bf16.mxu0 0
    %452 = vmatpush1.bf16.msra.mxu0 0
    %453 = vmatprep.subr.bf16.mxu0 0
    %454 = vmatpush1.bf16.msra.mxu0 0
    %455 = vmatprep.subr.bf16.mxu0 0
    %456 = vmatpush1.bf16.msra.mxu0 0
    %457 = vmatprep.subr.bf16.mxu0 0
    %458 = vmatpush1.bf16.msra.mxu0 0
    %459 = vmatprep.subr.bf16.mxu0 0
    %460 = vmatpush1.bf16.msra.mxu0 0
    %461 = vmatprep.subr.bf16.mxu0 0
    %462 = vmatpush1.bf16.msra.mxu0 0
    %463 = vmatprep.subr.bf16.mxu0 0
    %464 = vmatpush1.bf16.msra.mxu0 0
    %465 = vmatprep.subr.bf16.mxu0 0
    %466 = vmatpush1.bf16.msra.mxu0 0
    %467 = vmatprep.subr.bf16.mxu0 0
    %468 = vmatpush1.bf16.msra.mxu0 0
    %469 = vmatprep.subr.bf16.mxu0 0
    %470 = vmatpush1.bf16.msra.mxu0 0
    %471 = vmatprep.mubr.bf16.mxu0 0
    %472 = vmatmul.mubr.bf16.gmra.mrb[0].mxu0 %v437
    %v473 = vpop.f32.mrb[0].mxu0
    %v474 = vadd.f32 %v423, %v473
    %v475 = vpop.f32.mrb[0].mxu0
    %v476 = vpop.f32.mrb[0].mxu0
    %v477 = vpop.f32.mrb[0].mxu0
    %478 = vdwg.mxu0
    %v479 = vmax.f32 %v474, 0.0
    %v480 = vpack.c.bf16 %v479, %v479
    %v482 = vsel %vm51, %v39, 0
    %v485 = vsel %vm58, %v480, 0
    %487 = vmatprep.subr.bf16.mxu0 0
    %488 = vmatpush1.bf16.msra.mxu0 %v485
    %489 = vmatprep.subr.bf16.mxu0 0
    %490 = vmatpush1.bf16.msra.mxu0 0
    %491 = vmatprep.subr.bf16.mxu0 0
    %492 = vmatpush1.bf16.msra.mxu0 0
    %493 = vmatprep.subr.bf16.mxu0 0
    %494 = vmatpush1.bf16.msra.mxu0 0
    %495 = vmatprep.subr.bf16.mxu0 0
    %496 = vmatpush1.bf16.msra.mxu0 0
    %497 = vmatprep.subr.bf16.mxu0 0
    %498 = vmatpush1.bf16.msra.mxu0 0
    %499 = vmatprep.subr.bf16.mxu0 0
    %500 = vmatpush1.bf16.msra.mxu0 0
    %501 = vmatprep.subr.bf16.mxu0 0
    %502 = vmatpush1.bf16.msra.mxu0 0
    %503 = vmatprep.subr.bf16.mxu0 0
    %504 = vmatpush1.bf16.msra.mxu0 0
    %505 = vmatprep.subr.bf16.mxu0 0
    %506 = vmatpush1.bf16.msra.mxu0 0
    %507 = vmatprep.subr.bf16.mxu0 0
    %508 = vmatpush1.bf16.msra.mxu0 0
    %509 = vmatprep.subr.bf16.mxu0 0
    %510 = vmatpush1.bf16.msra.mxu0 0
    %511 = vmatprep.subr.bf16.mxu0 0
    %512 = vmatpush1.bf16.msra.mxu0 0
    %513 = vmatprep.subr.bf16.mxu0 0
    %514 = vmatpush1.bf16.msra.mxu0 0
    %515 = vmatprep.subr.bf16.mxu0 0
    %516 = vmatpush1.bf16.msra.mxu0 0
    %517 = vmatprep.subr.bf16.mxu0 0
    %518 = vmatpush1.bf16.msra.mxu0 0
    %519 = vmatprep.mubr.bf16.mxu0 0
    %520 = vmatmul.mubr.bf16.gmra.mrb[0].mxu0 %v482
    %v521 = vpop.f32.mrb[0].mxu0
    %v522 = vadd.f32 0.0, %v521
    %v523 = vpop.f32.mrb[0].mxu0
    %v524 = vpop.f32.mrb[0].mxu0
    %v525 = vpop.f32.mrb[0].mxu0
    %526 = vdwg.mxu0
    %s527 = scalar_lea.vmem [#allocation2], 80
    %v528 = vld [vmem:[%s527] sm:$0xf]
    %v529 = vld [vmem:[%s527 + $0x4] sm:$0xf]
    %v530 = vld [vmem:[%s527 + $0x8] sm:$0xf]
    %v531 = vld [vmem:[%s527 + $0xc] sm:$0xf]
    %v532 = vpack.c.bf16 %v522, %v522
    %v533 = vlaneseq
    %v534 = vshrl.u32 %v533, 7
    %v535 = vsub.s32 5, %v534
    %v536 = vrot.slane %v33, %v535
    %v541 = vunpack.c.l.b16 %v528
    %v542 = vunpack.c.l.b16 %v529
    %v543 = vunpack.c.l.b16 %v530
    %v544 = vunpack.c.l.b16 %v531
    %v545 = vpack.c.b16 %v542, %v541
    %v546 = vpack.c.b16 %v544, %v543
    %v550 = vsel %vm122, %v532, 0
    %552 = vmatprep.subr.bf16.mxu0 0
    %553 = vmatpush1.bf16.msra.mxu0 %v545
    %554 = vmatprep.subr.bf16.mxu0 0
    %555 = vmatpush1.bf16.msra.mxu0 %v546
    %556 = vmatprep.subr.bf16.mxu0 0
    %557 = vmatpush1.bf16.msra.mxu0 0
    %558 = vmatprep.subr.bf16.mxu0 0
    %559 = vmatpush1.bf16.msra.mxu0 0
    %560 = vmatprep.subr.bf16.mxu0 0
    %561 = vmatpush1.bf16.msra.mxu0 0
    %562 = vmatprep.subr.bf16.mxu0 0
    %563 = vmatpush1.bf16.msra.mxu0 0
    %564 = vmatprep.subr.bf16.mxu0 0
    %565 = vmatpush1.bf16.msra.mxu0 0
    %566 = vmatprep.subr.bf16.mxu0 0
    %567 = vmatpush1.bf16.msra.mxu0 0
    %568 = vmatprep.subr.bf16.mxu0 0
    %569 = vmatpush1.bf16.msra.mxu0 0
    %570 = vmatprep.subr.bf16.mxu0 0
    %571 = vmatpush1.bf16.msra.mxu0 0
    %572 = vmatprep.subr.bf16.mxu0 0
    %573 = vmatpush1.bf16.msra.mxu0 0
    %574 = vmatprep.subr.bf16.mxu0 0
    %575 = vmatpush1.bf16.msra.mxu0 0
    %576 = vmatprep.subr.bf16.mxu0 0
    %577 = vmatpush1.bf16.msra.mxu0 0
    %578 = vmatprep.subr.bf16.mxu0 0
    %579 = vmatpush1.bf16.msra.mxu0 0
    %580 = vmatprep.subr.bf16.mxu0 0
    %581 = vmatpush1.bf16.msra.mxu0 0
    %582 = vmatprep.subr.bf16.mxu0 0
    %583 = vmatpush1.bf16.msra.mxu0 0
    %584 = vmatprep.mubr.bf16.mxu0 0
    %585 = vmatmul.mubr.bf16.gmra.mrb[0].mxu0 %v550
    %v586 = vpop.f32.mrb[0].mxu0
    %v587 = vadd.f32 %v536, %v586
    %v588 = vpop.f32.mrb[0].mxu0
    %v589 = vpop.f32.mrb[0].mxu0
    %v590 = vpop.f32.mrb[0].mxu0
    %591 = vdwg.mxu0
    %v592 = vmax.f32 %v587, 0.0
    %s593 = scalar_lea.vmem [#allocation2], 96
    %v594 = vld [vmem:[%s593] sm:$0xf]
    %v595 = vld [vmem:[%s593 + $0x4] sm:$0xf]
    %v596 = vld [vmem:[%s593 + $0x8] sm:$0xf]
    %v597 = vld [vmem:[%s593 + $0xc] sm:$0xf]
    %v598 = vpack.c.bf16 %v592, %v592
    %v599 = vlaneseq
    %v600 = vshrl.u32 %v599, 7
    %v601 = vsub.s32 6, %v600
    %v602 = vrot.slane %v33, %v601
    %v607 = vunpack.c.l.b16 %v594
    %v608 = vunpack.c.l.b16 %v595
    %v609 = vunpack.c.l.b16 %v596
    %v610 = vunpack.c.l.b16 %v597
    %v611 = vpack.c.b16 %v608, %v607
    %v612 = vpack.c.b16 %v610, %v609
    %v616 = vsel %vm122, %v598, 0
    %618 = vmatprep.subr.bf16.mxu0 0
    %619 = vmatpush1.bf16.msra.mxu0 %v611
    %620 = vmatprep.subr.bf16.mxu0 0
    %621 = vmatpush1.bf16.msra.mxu0 %v612
    %622 = vmatprep.subr.bf16.mxu0 0
    %623 = vmatpush1.bf16.msra.mxu0 0
    %624 = vmatprep.subr.bf16.mxu0 0
    %625 = vmatpush1.bf16.msra.mxu0 0
    %626 = vmatprep.subr.bf16.mxu0 0
    %627 = vmatpush1.bf16.msra.mxu0 0
    %628 = vmatprep.subr.bf16.mxu0 0
    %629 = vmatpush1.bf16.msra.mxu0 0
    %630 = vmatprep.subr.bf16.mxu0 0
    %631 = vmatpush1.bf16.msra.mxu0 0
    %632 = vmatprep.subr.bf16.mxu0 0
    %633 = vmatpush1.bf16.msra.mxu0 0
    %634 = vmatprep.subr.bf16.mxu0 0
    %635 = vmatpush1.bf16.msra.mxu0 0
    %636 = vmatprep.subr.bf16.mxu0 0
    %637 = vmatpush1.bf16.msra.mxu0 0
    %638 = vmatprep.subr.bf16.mxu0 0
    %639 = vmatpush1.bf16.msra.mxu0 0
    %640 = vmatprep.subr.bf16.mxu0 0
    %641 = vmatpush1.bf16.msra.mxu0 0
    %642 = vmatprep.subr.bf16.mxu0 0
    %643 = vmatpush1.bf16.msra.mxu0 0
    %644 = vmatprep.subr.bf16.mxu0 0
    %645 = vmatpush1.bf16.msra.mxu0 0
    %646 = vmatprep.subr.bf16.mxu0 0
    %647 = vmatpush1.bf16.msra.mxu0 0
    %648 = vmatprep.subr.bf16.mxu0 0
    %649 = vmatpush1.bf16.msra.mxu0 0
    %650 = vmatprep.mubr.bf16.mxu0 0
    %651 = vmatmul.mubr.bf16.gmra.mrb[0].mxu0 %v616
    %v652 = vpop.f32.mrb[0].mxu0
    %v653 = vadd.f32 %v602, %v652
    %v654 = vpop.f32.mrb[0].mxu0
    %v655 = vpop.f32.mrb[0].mxu0
    %v656 = vpop.f32.mrb[0].mxu0
    %657 = vdwg.mxu0
    %vm658 = vcmask 58368
    %v659 = vsel %vm658, %v653, -inf
    %660 = vmax.xlane.f32.xlu0 %v659
    %v661 = vpop.xlane.xlu0 %660
    %v662 = vsub.f32 %v653, %v661
    %v663 = vmul.f32 %v662, 1.442695
    %v664 = vpow.pop %v663
    %v665 = vsel %vm658, %v664, 0.0
    %666 = vadd.xlane.f32.xlu0 %v665
    %v667 = vpop.xlane.xlu0 %666
    %v668 = vlog2.pop %v667
    %v669 = vmul.f32 %v668, 0.6931472
    %v670 = vadd.f32 %v661, %v669
    %v671 = vsub.f32 %v653, %v670
    %672 = vst.msk [vmem:[#allocation5] sm:$0x3] %vm658, %v671
    // Predicated region
    $region22: #{se2p_forward.1} parent=1 // pred_check
      _
    $region23: #{se2p_forward.1} parent=1 // pred_check_branch
      %674 = sbr.rel (0) target = $region25
    $region24: #{se2p_forward.1} parent=1 // pred_region
      %s676 = ssub.s32 32, 32
      %677 = vsyncadd [#allocation4], %s676
      %s679 = sshll.u32 [#allocation5], 4
      %s680 = int_to_ptr.vmem [resolvable:$true] %s679
      %682 = dma.vmem_to_hbm [thread:$0]  %s680, 32, %s4, [#allocation4]
    $region25: #{se2p_forward.1} parent=1 // pred_fallthru
      _
    // Predicated region
    $region26: #{se2p_forward.1} parent=1 // pred_check
      _
    $region27: #{se2p_forward.1} parent=1 // pred_check_branch
      %684 = sbr.rel (0) target = $region29
    $region28: #{se2p_forward.1} parent=1 // pred_region
      %685 = dma.done [#allocation4], 32
    $region29: #{se2p_forward.1} parent=1 // pred_fallthru
      _
    %686 = vsyncpa [#allocation3], 1
    %687 = vsyncpa [#allocation4], 1

</llo_original>
